<compile_context>
chip_gen: v6e
topology: v6e:2x2x1
jax: 0.10.0
libtpu: 0.0.40
codegen_flags: <defaults>
</compile_context>

<pallas_src>
import functools

import jax
import jax.numpy as jnp
from jax.experimental import pallas as pl
from jax.experimental.pallas import tpu as pltpu


def _cdiv(a, b):
    return -(-a // b)


def _round_up(a, b):
    return _cdiv(a, b) * b


def _masked_mse_kernel(x_ref, t_ref, m_ref, num_ref, den_ref, *,
                       n_rows, tm, steps, strip):
    c = pl.program_id(0)
    i = pl.program_id(1)
    # Logical (un-clamped) block index -> first global row of this block.  The
    # index_map clamps the DMA to the last valid block, so duplicated /
    # overhanging blocks are neutralized purely by the validity predicate.
    base = (c * steps + i) * tm

    d = x_ref.shape[1]
    n_strips = tm // strip
    row_iota = jax.lax.broadcasted_iota(jnp.int32, (strip, 1), 0)

    def strip_body(s, carry):
        acc, dacc = carry
        r = pl.multiple_of(s * strip, strip)
        x_s = x_ref[pl.ds(r, strip), :].astype(jnp.float32)     # (strip, D)
        t_s = t_ref[pl.ds(r, strip), :].astype(jnp.float32)     # (strip, D)
        m_s = m_ref[pl.ds(r, strip), :].astype(jnp.float32)     # (strip, 1)
        valid = (base + r + row_iota) < n_rows                   # (strip, 1)
        m_eff = jnp.where(valid, m_s, 0.0)
        mb = jnp.broadcast_to(m_eff, (strip, d))   # bind broadcast once, reuse
        diff = x_s - t_s * mb
        sq = diff * diff * mb
        # Tail / duplicated rows may hold arbitrary HBM/VMEM garbage (possibly
        # NaN or Inf): exclude with a select, NOT by multiplying by zero.
        sq = jnp.where(valid, sq, 0.0)
        return acc + sq, dacc + m_eff

    acc0 = jnp.zeros((strip, d), jnp.float32)
    den0 = jnp.zeros((strip, 1), jnp.float32)
    acc, dacc = jax.lax.fori_loop(0, n_strips, strip_body, (acc0, den0))

    # Fold the strip-height carry down to 8 sublanes (pure vreg-wise adds).
    acc8 = acc[0:8, :]
    den8 = dacc[0:8, :]
    for r in range(8, strip, 8):
        acc8 = acc8 + acc[r:r + 8, :]
        den8 = den8 + dacc[r:r + 8, :]

    @pl.when(i == 0)
    def _():
        num_ref[...] = jnp.zeros_like(num_ref)
        den_ref[...] = jnp.zeros_like(den_ref)

    # Output blocks are chunk-resident across the reduction axis: one small
    # VMEM read-modify-write per grid step, written back to HBM once per chunk.
    num_ref[0] += acc8
    den_ref[0] += den8


def _choose_tiling(n_rows, d, itemsize, *, vmem_budget_bytes, num_chunks):
    # Native sublane tile height for the streamed dtype (packing-aware).
    sub = {1: 32, 2: 16, 4: 8}.get(itemsize, 8)
    d_lanes = _round_up(d, 128)
    # Per-row pipelined VMEM bytes: 2 data inputs x 2 buffers x lane-padded row
    # + 2 mask buffers x 128 lanes x 4 B (the (tm,1) mask sliver is lane-padded).
    per_row = 2 * 2 * d_lanes * itemsize + 2 * 128 * 4
    tm = max(sub, (vmem_budget_bytes // per_row) // sub * sub)
    tm = min(tm, _round_up(max(n_rows, 1), sub))
    row_blocks = _cdiv(n_rows, tm)
    chunks = max(1, min(num_chunks, row_blocks))
    steps = _cdiv(row_blocks, chunks)
    return tm, chunks, steps, row_blocks, sub


def masked_mse_sums(x, t, mask, *, vmem_budget_bytes=40 * 1024 * 1024,
                    num_chunks=2):
    """Returns (numerator, denominator) as f32 scalars via one Pallas kernel."""
    assert x.ndim == 2 and x.shape == t.shape, (x.shape, t.shape)
    n, d = x.shape
    m = jnp.reshape(mask, (-1, 1)).astype(jnp.float32)          # mask.view(-1, 1)
    assert m.shape[0] == n, (m.shape, x.shape)

    itemsize = max(jnp.dtype(x.dtype).itemsize, jnp.dtype(t.dtype).itemsize)
    tm, chunks, steps, row_blocks, strip = _choose_tiling(
        n, d, itemsize, vmem_budget_bytes=vmem_budget_bytes,
        num_chunks=num_chunks)

    # TODO(synk): for very large feature dims also tile D (multiples of 128) to
    # keep the per-strip vreg working set small; this version keeps full D.

    # Derive the scoped VMEM limit from the actual double-buffered footprint
    # (kept <= ~48 MiB by the default budget so v7x's 64 MiB/TC is safe).
    d_lanes = _round_up(d, 128)
    pipelined = (2 * 2 * d_lanes * itemsize + 2 * 128 * 4) * tm
    out_bytes = 2 * (8 * d_lanes * 4 + 8 * 128 * 4)
    vmem_limit = int(min(max(pipelined + out_bytes + (4 << 20), 16 << 20),
                         100 << 20))

    last_block = row_blocks - 1
    need_clamp = chunks * steps != row_blocks

    def blk_map(c, i):
        b = c * steps + i
        if need_clamp:
            # Clamp so the DMA never starts past the array end; duplicated
            # blocks contribute nothing (validity predicate in the kernel).
            b = jnp.minimum(b, last_block)
        return (b, 0)

    kernel = functools.partial(_masked_mse_kernel, n_rows=n, tm=tm,
                               steps=steps, strip=strip)

    num_p, den_p = pl.pallas_call(
        kernel,
        out_shape=(
            jax.ShapeDtypeStruct((chunks, 8, d), jnp.float32),
            jax.ShapeDtypeStruct((chunks, 8, 1), jnp.float32),
        ),
        grid_spec=pltpu.PrefetchScalarGridSpec(
            num_scalar_prefetch=0,
            grid=(chunks, steps),
            in_specs=[
                pl.BlockSpec((tm, d), blk_map),
                pl.BlockSpec((tm, d), blk_map),
                pl.BlockSpec((tm, 1), blk_map),
            ],
            out_specs=[
                pl.BlockSpec((1, 8, d), lambda c, i: (c, 0, 0)),
                pl.BlockSpec((1, 8, 1), lambda c, i: (c, 0, 0)),
            ],
        ),
        compiler_params=pltpu.CompilerParams(
            dimension_semantics=("parallel", "arbitrary"),
            vmem_limit_bytes=vmem_limit,
        ),
    )(x, t, m)

    # Tiny final reductions (chunks*8*(D+1) elements) stay in plain JAX.
    num = jnp.sum(num_p)
    den = jnp.sum(den_p)
    return num, den


@jax.jit
def masked_mse_loss_device(x, t, mask):
    """Sync-free device path: returns (loss, den) with a safe divide."""
    num, den = masked_mse_sums(x, t, mask)
    loss = num / jnp.where(den > 0, den, 1.0)
    return loss, den


def masked_mse_loss(x, t, mask):
    """Exact PyTorch forward semantics (returns 'Ignored' when sum(mask)==0).

    The string branch requires one device->host readback of `den`; use
    masked_mse_loss_device directly inside jitted training loops.
    """
    loss, den = masked_mse_loss_device(x, t, mask)
    if float(jax.device_get(den)) == 0.0:
        return "Ignored"
    return loss


if __name__ == "__main__":
    key = jax.random.PRNGKey(0)
    kx, kt, km = jax.random.split(key, 3)

    # Small demo shapes: 16 flattened samples, 32 features.
    N, D = 16, 32
    x = jax.random.normal(kx, (N, D), dtype=jnp.float32)
    t = jax.random.normal(kt, (N, D), dtype=jnp.float32)
    mask = (jax.random.uniform(km, (N,)) > 0.3).astype(jnp.float32)

    loss = masked_mse_loss(x, t, mask)
    loss = jax.block_until_ready(loss)

    # Pure-JAX reference check.
    m2 = mask.reshape(-1, 1)
    ref = jnp.sum(((x - t * m2) ** 2) * m2) / jnp.sum(m2)
    assert jnp.allclose(loss, ref, rtol=1e-5, atol=1e-5), (loss, ref)

    # Zero-mask ("Ignored") branch.
    zero_mask = jnp.zeros((N,), dtype=jnp.float32)
    assert masked_mse_loss(x, t, zero_mask) == "Ignored"

    # Exercise the un-padded tail rows + multiple chunks / grid steps with tiny
    # blocks, and a NON-binary mask (semantics must not assume mask in {0,1}).
    N2, D2 = 45, 32
    k1, k2, k3 = jax.random.split(jax.random.PRNGKey(1), 3)
    x2 = jax.random.normal(k1, (N2, D2), dtype=jnp.float32)
    t2 = jax.random.normal(k2, (N2, D2), dtype=jnp.float32)
    mask2 = jax.random.uniform(k3, (N2,)) * (
        jax.random.uniform(jax.random.PRNGKey(2), (N2,)) > 0.4)
    num2, den2 = masked_mse_sums(x2, t2, mask2,
                                 vmem_budget_bytes=8 * 3072, num_chunks=2)
    got2 = num2 / den2
    jax.block_until_ready(got2)
    m22 = mask2.reshape(-1, 1).astype(jnp.float32)
    ref2 = jnp.sum(((x2 - t2 * m22) ** 2) * m22) / jnp.sum(m22)
    assert jnp.allclose(got2, ref2, rtol=1e-5, atol=1e-5), (got2, ref2)

    # bf16 streaming path (inputs stay bf16 end-to-end; math in f32).
    xb = x2.astype(jnp.bfloat16)
    tb = t2.astype(jnp.bfloat16)
    numb, denb = masked_mse_sums(xb, tb, mask2)
    gotb = numb / denb
    jax.block_until_ready(gotb)
    x2f = xb.astype(jnp.float32)
    t2f = tb.astype(jnp.float32)
    refb = jnp.sum(((x2f - t2f * m22) ** 2) * m22) / jnp.sum(m22)
    assert jnp.allclose(gotb, refb, rtol=2e-2, atol=2e-2), (gotb, refb)

    print("KERNEL_OK")
</pallas_src>

<mosaic_0001>
module attributes {stable_mosaic.version = 11 : i64} {
  func.func @_masked_mse_kernel(%arg0: i32, %arg1: i32, %arg2: memref<16x32xf32, #tpu.memory_space<vmem>>, %arg3: memref<16x32xf32, #tpu.memory_space<vmem>>, %arg4: memref<16x1xf32, #tpu.memory_space<vmem>>, %arg5: memref<1x8x32xf32, #tpu.memory_space<vmem>>, %arg6: memref<1x8x1xf32, #tpu.memory_space<vmem>>) attributes {dimension_semantics = [#tpu.dimension_semantics<parallel>, #tpu.dimension_semantics<arbitrary>], iteration_bounds = array<i64: 1, 1>, scalar_prefetch = 0 : i64, scratch_operands = 0 : i64, tpu.core_type = #tpu.core_type<tc>, window_params = [{transform_indices = @transform_0, window_bounds = array<i64: 16, 32>}, {transform_indices = @transform_1, window_bounds = array<i64: 16, 32>}, {transform_indices = @transform_2, window_bounds = array<i64: 16, 1>}, {transform_indices = @transform_3, window_bounds = array<i64: 1, 8, 32>}, {transform_indices = @transform_4, window_bounds = array<i64: 1, 8, 1>}]} {
    %c1_i32 = arith.constant 1 : i32
    %0 = arith.muli %arg0, %c1_i32 : i32
    %1 = arith.addi %0, %arg1 : i32
    %c16_i32 = arith.constant 16 : i32
    %2 = arith.muli %1, %c16_i32 : i32
    %3 = tpu.iota {dimensions = array<i32: 0>} : vector<8x1xi32>
    %cst = arith.constant 0.000000e+00 : f32
    %4 = vector.broadcast %cst : f32 to vector<8x32xf32>
    %cst_0 = arith.constant 0.000000e+00 : f32
    %5 = vector.broadcast %cst_0 : f32 to vector<8x1xf32>
    %c0_i32 = arith.constant 0 : i32
    %c2_i32 = arith.constant 2 : i32
    %6 = arith.addi %c0_i32, %c2_i32 : i32
    %c1_i32_1 = arith.constant 1 : i32
    %7:2 = scf.for %arg7 = %c0_i32 to %6 step %c1_i32_1 iter_args(%arg8 = %4, %arg9 = %5) -> (vector<8x32xf32>, vector<8x1xf32>)  : i32 {
      %c8_i32 = arith.constant 8 : i32
      %23 = arith.muli %arg7, %c8_i32 : i32
      %24 = tpu.assume_multiple %23, 8 : i32
      %25 = arith.index_cast %24 : i32 to index
      %c0_16 = arith.constant 0 : index
      %26 = vector.load %arg2[%25, %c0_16] : memref<16x32xf32, #tpu.memory_space<vmem>>, vector<8x32xf32>
      %27 = arith.index_cast %24 : i32 to index
      %c0_17 = arith.constant 0 : index
      %28 = vector.load %arg3[%27, %c0_17] : memref<16x32xf32, #tpu.memory_space<vmem>>, vector<8x32xf32>
      %29 = arith.index_cast %24 : i32 to index
      %c0_18 = arith.constant 0 : index
      %30 = vector.load %arg4[%29, %c0_18] : memref<16x1xf32, #tpu.memory_space<vmem>>, vector<8x1xf32>
      %31 = arith.addi %2, %24 : i32
      %32 = vector.broadcast %31 : i32 to vector<8x1xi32>
      %33 = arith.addi %32, %3 : vector<8x1xi32>
      %c16_i32_19 = arith.constant 16 : i32
      %34 = vector.broadcast %c16_i32_19 : i32 to vector<8x1xi32>
      %35 = arith.cmpi slt, %33, %34 : vector<8x1xi32>
      %cst_20 = arith.constant 0.000000e+00 : f32
      %36 = vector.broadcast %cst_20 : f32 to vector<8x1xf32>
      %37 = arith.select %35, %30, %36 : vector<8x1xi1>, vector<8x1xf32>
      %38 = vector.shape_cast %37 : vector<8x1xf32> to vector<8x1xf32>
      %39 = vector.broadcast %38 : vector<8x1xf32> to vector<8x32xf32>
      %40 = arith.mulf %28, %39 : vector<8x32xf32>
      %41 = arith.subf %26, %40 : vector<8x32xf32>
      %42 = arith.mulf %41, %41 : vector<8x32xf32>
      %43 = arith.mulf %42, %39 : vector<8x32xf32>
      %cst_21 = arith.constant 0.000000e+00 : f32
      %44 = vector.shape_cast %35 : vector<8x1xi1> to vector<8x1xi1>
      %45 = vector.broadcast %44 : vector<8x1xi1> to vector<8x32xi1>
      %46 = vector.broadcast %cst_21 : f32 to vector<8x32xf32>
      %47 = arith.select %45, %43, %46 : vector<8x32xi1>, vector<8x32xf32>
      %48 = arith.addf %arg8, %47 : vector<8x32xf32>
      %49 = arith.addf %arg9, %37 : vector<8x1xf32>
      scf.yield %48, %49 : vector<8x32xf32>, vector<8x1xf32>
    }
    %c2_i32_2 = arith.constant 2 : i32
    %c0_i32_3 = arith.constant 0 : i32
    %8 = arith.cmpi eq, %arg1, %c0_i32_3 : i32
    %9 = arith.extui %8 : i1 to i32
    %c0_i32_4 = arith.constant 0 : i32
    %10 = arith.cmpi ne, %9, %c0_i32_4 : i32
    scf.if %10 {
      %cst_16 = arith.constant 0.000000e+00 : f32
      %23 = vector.broadcast %cst_16 : f32 to vector<1x8x32xf32>
      %c0_17 = arith.constant 0 : index
      %c0_18 = arith.constant 0 : index
      %c0_19 = arith.constant 0 : index
      %24 = vector.load %arg5[%c0_17, %c0_18, %c0_19] : memref<1x8x32xf32, #tpu.memory_space<vmem>>, vector<1x8x32xf32>
      tpu.vector_store %arg5[%c0_17, %c0_18, %c0_19], %23 {strides = array<i32>} : memref<1x8x32xf32, #tpu.memory_space<vmem>>, vector<1x8x32xf32>,
      %cst_20 = arith.constant 0.000000e+00 : f32
      %25 = vector.broadcast %cst_20 : f32 to vector<1x8x1xf32>
      %c0_21 = arith.constant 0 : index
      %c0_22 = arith.constant 0 : index
      %c0_23 = arith.constant 0 : index
      %26 = vector.load %arg6[%c0_21, %c0_22, %c0_23] : memref<1x8x1xf32, #tpu.memory_space<vmem>>, vector<1x8x1xf32>
      tpu.vector_store %arg6[%c0_21, %c0_22, %c0_23], %25 {strides = array<i32>} : memref<1x8x1xf32, #tpu.memory_space<vmem>>, vector<1x8x1xf32>,
    } else {
    }
    %c0 = arith.constant 0 : index
    %c0_5 = arith.constant 0 : index
    %c0_6 = arith.constant 0 : index
    %11 = vector.load %arg5[%c0, %c0_5, %c0_6] : memref<1x8x32xf32, #tpu.memory_space<vmem>>, vector<1x8x32xf32>
    %12 = vector.shape_cast %11 : vector<1x8x32xf32> to vector<8x32xf32>
    %13 = arith.addf %12, %7#0 : vector<8x32xf32>
    %c0_7 = arith.constant 0 : index
    %c0_8 = arith.constant 0 : index
    %c0_9 = arith.constant 0 : index
    %14 = vector.load %arg5[%c0_7, %c0_8, %c0_9] : memref<1x8x32xf32, #tpu.memory_space<vmem>>, vector<1x8x32xf32>
    %15 = vector.shape_cast %14 : vector<1x8x32xf32> to vector<8x32xf32>
    %16 = vector.shape_cast %13 : vector<8x32xf32> to vector<1x8x32xf32>
    tpu.vector_store %arg5[%c0_7, %c0_8, %c0_9], %16 {strides = array<i32>} : memref<1x8x32xf32, #tpu.memory_space<vmem>>, vector<1x8x32xf32>,
    %c0_10 = arith.constant 0 : index
    %c0_11 = arith.constant 0 : index
    %c0_12 = arith.constant 0 : index
    %17 = vector.load %arg6[%c0_10, %c0_11, %c0_12] : memref<1x8x1xf32, #tpu.memory_space<vmem>>, vector<1x8x1xf32>
    %18 = vector.shape_cast %17 : vector<1x8x1xf32> to vector<8x1xf32>
    %19 = arith.addf %18, %7#1 : vector<8x1xf32>
    %c0_13 = arith.constant 0 : index
    %c0_14 = arith.constant 0 : index
    %c0_15 = arith.constant 0 : index
    %20 = vector.load %arg6[%c0_13, %c0_14, %c0_15] : memref<1x8x1xf32, #tpu.memory_space<vmem>>, vector<1x8x1xf32>
    %21 = vector.shape_cast %20 : vector<1x8x1xf32> to vector<8x1xf32>
    %22 = vector.shape_cast %19 : vector<8x1xf32> to vector<1x8x1xf32>
    tpu.vector_store %arg6[%c0_13, %c0_14, %c0_15], %22 {strides = array<i32>} : memref<1x8x1xf32, #tpu.memory_space<vmem>>, vector<1x8x1xf32>,
    return
  }
  func.func @transform_0(%arg0: i32, %arg1: i32) -> (i32, i32) {
    %c1_i32 = arith.constant 1 : i32
    %0 = arith.muli %arg0, %c1_i32 : i32
    %1 = arith.addi %0, %arg1 : i32
    %c0_i32 = arith.constant 0 : i32
    %c0_i32_0 = arith.constant 0 : i32
    return %1, %c0_i32 : i32, i32
  }
  func.func @transform_1(%arg0: i32, %arg1: i32) -> (i32, i32) {
    %c1_i32 = arith.constant 1 : i32
    %0 = arith.muli %arg0, %c1_i32 : i32
    %1 = arith.addi %0, %arg1 : i32
    %c0_i32 = arith.constant 0 : i32
    %c0_i32_0 = arith.constant 0 : i32
    return %1, %c0_i32 : i32, i32
  }
  func.func @transform_2(%arg0: i32, %arg1: i32) -> (i32, i32) {
    %c1_i32 = arith.constant 1 : i32
    %0 = arith.muli %arg0, %c1_i32 : i32
    %1 = arith.addi %0, %arg1 : i32
    %c0_i32 = arith.constant 0 : i32
    %c0_i32_0 = arith.constant 0 : i32
    return %1, %c0_i32 : i32, i32
  }
  func.func @transform_3(%arg0: i32, %arg1: i32) -> (i32, i32, i32) {
    %c0_i32 = arith.constant 0 : i32
    %c0_i32_0 = arith.constant 0 : i32
    %c0_i32_1 = arith.constant 0 : i32
    return %arg0, %c0_i32, %c0_i32_0 : i32, i32, i32
  }
  func.func @transform_4(%arg0: i32, %arg1: i32) -> (i32, i32, i32) {
    %c0_i32 = arith.constant 0 : i32
    %c0_i32_0 = arith.constant 0 : i32
    %c0_i32_1 = arith.constant 0 : i32
    return %arg0, %c0_i32, %c0_i32_0 : i32, i32, i32
  }
}

</mosaic_0001>

<llo_original>
// kernel: masked_mse_loss_device.1
$region0: #{masked_mse_loss_device.1}
  #allocation0 [shape = 'u32[]', space=smem, size = 0x4, offset = 0x4, fixed_abs, tag = 'smem constant byte address 0x4 - core index']
  #allocation1 [shape = 'u32[144,128]{1,0:T(1,128)}', space=vmem, size = 0x12000, scoped, tag = 'internal scratch']
  %s0 = inlined_call_operand.vmem [shape: f32[16,32], index: 0, kind: input, shape index: {}]
  %s1 = inlined_call_operand.hbm [shape: f32[16,32], index: 1, kind: input, shape index: {}]
  %s2 = inlined_call_operand.vmem [shape: f32[16,1], index: 2, kind: input, shape index: {}]
  %s3 = inlined_call_operand.vmem [shape: f32[1,8,32], index: 3, kind: output, shape index: {0}]
  %s4 = inlined_call_operand.vmem [shape: f32[1,8,1], index: 4, kind: output, shape index: {1}]
  %5 = xla_tuple %s3, %s4
  %s6 = sld [smem:[#allocation0]]
  $region45: #{masked_mse_loss_device.1} parent=0
    _
  %s8 = ssub.s32 1, %s6
  %s9 = scalar_select 0, %s8, %s6
  $region1: #{masked_mse_loss_device.1} parent=0
    #allocation2 [shape = 'u8[8192]{0}', space=vmem, size = 0x2000, scoped, tag = 'input window, operand 1, single buffered']
    #allocation3 [shape = 's32[1]{0}', space=sflag, size = 0x4, scoped, tag = 'scoped memory for masked_mse_loss_device.1']
    %10 = vsyncpa [#allocation3], 0
    // Predicated region
    $region2: #{masked_mse_loss_device.1} parent=1 // pred_check
      _
    $region3: #{masked_mse_loss_device.1} parent=1 // pred_check_branch
      %12 = sbr.rel (0) target = $region5
    $region4: #{masked_mse_loss_device.1} parent=1 // pred_region
      %s13 = sadd.s32 0, 0
      %s14 = smul.u32 2, %s13
      %p15 = scmp.lt.s32.totalorder %s14, 1
      %s16 = scalar_select %p15, %s14, 1
      %s17 = smul.addr %s16, 8
      %s18 = scalar_lea.vmem %s0, %s17
      %s19 = sadd.s32 0, 0
      %s20 = smul.u32 2, %s19
    $region5: #{masked_mse_loss_device.1} parent=1 // pred_fallthru
      _
    // Predicated region
    $region6: #{masked_mse_loss_device.1} parent=1 // pred_check
      _
    $region7: #{masked_mse_loss_device.1} parent=1 // pred_check_branch
      %22 = sbr.rel (0) target = $region9
    $region8: #{masked_mse_loss_device.1} parent=1 // pred_region
      %s23 = sadd.s32 0, 0
      %s24 = smul.u32 2, %s23
      %s26 = ssub.s32 256, 256
      %27 = vsyncadd [#allocation3], %s26
      %s28 = smul.addr %s24, 128
      %s29 = scalar_lea.hbm %s1, %s28
      %s30 = sshll.u32 [#allocation2], 4
      %s31 = int_to_ptr.vmem [resolvable:$true] %s30
      %36 = dma.hbm_to_vmem [thread:$0]  %s29, 256, %s31, [#allocation3], 128, 128, 8
    $region9: #{masked_mse_loss_device.1} parent=1 // pred_fallthru
      _
    // Predicated region
    $region10: #{masked_mse_loss_device.1} parent=1 // pred_check
      _
    $region11: #{masked_mse_loss_device.1} parent=1 // pred_check_branch
      %38 = sbr.rel (0) target = $region13
    $region12: #{masked_mse_loss_device.1} parent=1 // pred_region
      %s39 = sadd.s32 0, 0
      %s40 = smul.u32 2, %s39
      %p41 = scmp.lt.s32.totalorder %s40, 1
      %s42 = scalar_select %p41, %s40, 1
      %s43 = smul.addr %s42, 8
      %s44 = scalar_lea.vmem %s2, %s43
      %s45 = sadd.s32 0, 0
      %s46 = smul.u32 2, %s45
    $region13: #{masked_mse_loss_device.1} parent=1 // pred_fallthru
      _
    // Predicated region
    $region14: #{masked_mse_loss_device.1} parent=1 // pred_check
      _
    $region15: #{masked_mse_loss_device.1} parent=1 // pred_check_branch
      %48 = sbr.rel (0) target = $region17
    $region16: #{masked_mse_loss_device.1} parent=1 // pred_region
      %49 = dma.done [#allocation3], 256
    $region17: #{masked_mse_loss_device.1} parent=1 // pred_fallthru
      _
    %s50 = sadd.s32 0, 0
    %s51 = smul.u32 2, %s50
    %p52 = scmp.lt.s32.totalorder %s51, 1
    %s53 = scalar_select %p52, %s51, 1
    %s54 = smul.addr %s53, 8
    %s55 = scalar_lea.vmem %s0, %s54
    %s56 = sadd.s32 0, 0
    %s57 = smul.u32 2, %s56
    %p58 = scmp.lt.s32.totalorder %s57, 1
    %s59 = scalar_select %p58, %s57, 1
    %s60 = smul.addr %s59, 8
    %s61 = scalar_lea.vmem %s2, %s60
    %s62 = sadd.s32 0, 0
    %s63 = smul.u32 2, %s62
    %p64 = scmp.lt.s32.totalorder %s63, 1
    %s65 = scalar_select %p64, %s63, 1
    %s66 = smul.addr %s65, 8
    %s67 = scalar_lea.vmem %s0, %s66
    %s68 = sadd.s32 0, 0
    %s69 = smul.u32 2, %s68
    %s70 = sadd.s32 0, 0
    %s71 = smul.u32 2, %s70
    %s72 = sadd.s32 0, 0
    %s73 = smul.u32 2, %s72
    %p74 = scmp.lt.s32.totalorder %s73, 1
    %s75 = scalar_select %p74, %s73, 1
    %s76 = smul.addr %s75, 8
    %s77 = scalar_lea.vmem %s2, %s76
    %s78 = sadd.s32 0, 0
    %s79 = smul.u32 2, %s78
    %s80 = sadd.s32 0, 0
    %s81 = smul.u32 %s80, 16
    %v82 = vlaneseq
    %v83 = vshrl.u32 %v82, 7
    loop: start=0, step=1, limit=2
    $region18: #{masked_mse_loss_device.1} parent=1 // loop_pre_header
      _
    $region19: #{masked_mse_loss_device.1} parent=1 // loop_header
      %s85 = sphi 0, %s89
      %p86 = scmp.ge.s32.totalorder %s85, 2
      %v90 = vphi 0.0, %v116
      %v91 = vphi 0.0, %v117
    $region20: #{masked_mse_loss_device.1} parent=1 // loop_header_branch
      %88 = sbr.rel (%p86) target = $region24
    $region21: #{masked_mse_loss_device.1} parent=1 // loop_body
      %s92 = smul.u32 %s85, 8
      %s93 = scalar_lea.vmem %s67, %s92
      %v94 = vld [vmem:[%s93] sm:$0xff]
      %s95 = scalar_lea.vmem [#allocation2], %s92
      %v96 = vld [vmem:[%s95] sm:$0xff]
      %s97 = scalar_lea.vmem %s77, %s92
      %v98 = vld [vmem:[%s97] sm:$0xff]
      %s99 = sadd.s32 %s81, %s92
      %v100 = vstv %s99
      %v101 = vadd.s32 %v100, %v83
      %vm102 = vcmp.lt.s32.totalorder %v101, 16
      %v103 = vsel %vm102, %v98, 0.0
      %105 = vset.pattern.permute.xlu0 0
      %106 = vperm.xlu0 %105, %v103
      %v107 = vpop.permute.xlu0 %106
      %v109 = vmul.f32 %v96, %v107
      %v110 = vsub.f32 %v94, %v109
      %v111 = vmul.f32 %v110, %v110
      %v112 = vmul.f32 %v111, %v107
      %v113 = vsel %vm102, 1, 0
      %vm114 = vcmp.eq.s32.totalorder %v113, 1
      %v115 = vsel %vm114, %v112, 0.0
      %v116 = vadd.f32 %v90, %v115
      %v117 = vadd.f32 %v91, %v103
    $region22: #{masked_mse_loss_device.1} parent=1 // loop_footer
      %s89 = sadd.s32 1, %s85
    $region23: #{masked_mse_loss_device.1} parent=1 // loop_footer_branch
      %84 = sbr.rel target = $region19
    $region24: #{masked_mse_loss_device.1} parent=1 // loop_exit
      _
    %p118 = scmp.eq.s32.totalorder 0, 0
    // Predicated region
    $region25: #{masked_mse_loss_device.1} parent=1 // pred_check
      %p119 = pneg %p118
    $region26: #{masked_mse_loss_device.1} parent=1 // pred_check_branch
      %121 = sbr.rel (%p119) target = $region28
    $region27: #{masked_mse_loss_device.1} parent=1 // pred_region
      %vm122 = vcmask 261120
      %123 = vst.msk [vmem:[%s3] sm:$0xff] %vm122, 0.0
      %vm124 = vcmask 7168
      %125 = vst.msk [vmem:[%s4] sm:$0xff] %vm124, 0.0
    $region28: #{masked_mse_loss_device.1} parent=1 // pred_fallthru
      _
    %v126 = vld [vmem:[%s3] sm:$0xff]
    %v127 = vadd.f32 %v126, %v90
    %vm128 = vcmask 261120
    %129 = vst.msk [vmem:[%s3] sm:$0xff] %vm128, %v127
    %v130 = vld [vmem:[%s4] sm:$0xff]
    %v131 = vadd.f32 %v130, %v91
    %vm132 = vcmask 7168
    %133 = vst.msk [vmem:[%s4] sm:$0xff] %vm132, %v131
    // Predicated region
    $region29: #{masked_mse_loss_device.1} parent=1 // pred_check
      _
    $region30: #{masked_mse_loss_device.1} parent=1 // pred_check_branch
      %135 = sbr.rel (0) target = $region32
    $region31: #{masked_mse_loss_device.1} parent=1 // pred_region
      _
    $region32: #{masked_mse_loss_device.1} parent=1 // pred_fallthru
      _
    // Predicated region
    $region33: #{masked_mse_loss_device.1} parent=1 // pred_check
      _
    $region34: #{masked_mse_loss_device.1} parent=1 // pred_check_branch
      %137 = sbr.rel (0) target = $region36
    $region35: #{masked_mse_loss_device.1} parent=1 // pred_region
      _
    $region36: #{masked_mse_loss_device.1} parent=1 // pred_fallthru
      _
    // Predicated region
    $region37: #{masked_mse_loss_device.1} parent=1 // pred_check
      _
    $region38: #{masked_mse_loss_device.1} parent=1 // pred_check_branch
      %139 = sbr.rel (0) target = $region40
    $region39: #{masked_mse_loss_device.1} parent=1 // pred_region
      _
    $region40: #{masked_mse_loss_device.1} parent=1 // pred_fallthru
      _
    // Predicated region
    $region41: #{masked_mse_loss_device.1} parent=1 // pred_check
      _
    $region42: #{masked_mse_loss_device.1} parent=1 // pred_check_branch
      %141 = sbr.rel (0) target = $region44
    $region43: #{masked_mse_loss_device.1} parent=1 // pred_region
      _
    $region44: #{masked_mse_loss_device.1} parent=1 // pred_fallthru
      _
    %142 = vsyncpa [#allocation3], 1

</llo_original>
